<compile_context>
chip_gen: v7x
topology: tpu7x:2x2x1
jax: 0.10.0
libtpu: 0.0.40
codegen_flags: <defaults>
</compile_context>

<pallas_src>
import functools

import jax
import jax.numpy as jnp
from jax.experimental import pallas as pl
from jax.experimental.pallas import tpu as pltpu

ZDIM = 8
INPUT_SIZE = 17
ENC_H = 32
SCORE_W = 2 * ZDIM        # 16 real lanes: [0:8]=mu, [8:16]=sigma


def _round_up(v, m):
    return ((v + m - 1) // m) * m


def encoder_kernel(x_ref, w0_ref, b0_ref, w1_ref, b1_ref,
                   w2m_ref, b2m_ref, w2s_ref, b2s_ref,
                   mu_ref, sigma_ref, *, compute_dtype):
    # MXU matmuls (bf16 or f32 inputs, f32 accumulation) + VPU bias/relu (f32).
    x = x_ref[...].astype(compute_dtype)
    h = jnp.dot(x, w0_ref[...], preferred_element_type=jnp.float32) + b0_ref[...]
    h = jnp.maximum(h, 0.0)
    h = jnp.dot(h.astype(compute_dtype), w1_ref[...],
                preferred_element_type=jnp.float32) + b1_ref[...]
    h = jnp.maximum(h, 0.0).astype(compute_dtype)
    # Final layer split into two narrow heads -> direct mu / sigma stores,
    # exact-size HBM writeback, no lane-offset slicing anywhere.
    mu_ref[...] = jnp.dot(h, w2m_ref[...],
                          preferred_element_type=jnp.float32) + b2m_ref[...]
    sigma_ref[...] = jnp.dot(h, w2s_ref[...],
                             preferred_element_type=jnp.float32) + b2s_ref[...]


def encoder_forward(x, params, *, tile_b=2048, compute_dtype=jnp.bfloat16):
    """x: (B, INPUT_SIZE) f32. Returns (mu, sigma), each (B, ZDIM) f32."""
    (w0, b0), (w1, b1), (w2, b2) = params
    B = x.shape[0]

    # --- batch tiling: multiple-of-8 tile, pad B, keep grid >= 2 if possible
    tile_b = max(8, _round_up(int(tile_b), 8))
    if B < 2 * tile_b:
        tile_b = max(8, _round_up(pl.cdiv(B, 2), 8))
    B_pad = _round_up(B, tile_b)
    grid = (B_pad // tile_b,)
    if B_pad != B:
        x = jnp.concatenate(
            [x, jnp.zeros((B_pad - B, INPUT_SIZE), x.dtype)], axis=0)

    # Split the final layer into mu / sigma halves (tiny host-side slices).
    w2m, w2s = w2[:, :ZDIM], w2[:, ZDIM:SCORE_W]
    b2m, b2s = b2[:, :ZDIM], b2[:, ZDIM:SCORE_W]

    # Weights feed the MXU in compute_dtype; biases stay f32 (accumulator dtype).
    w0c = w0.astype(compute_dtype)
    w1c = w1.astype(compute_dtype)
    w2mc = w2m.astype(compute_dtype)
    w2sc = w2s.astype(compute_dtype)

    def const_spec(shp):
        return pl.BlockSpec(shp, lambda i: (0, 0))

    flops = 2 * B_pad * (INPUT_SIZE * ENC_H + ENC_H * ENC_H + ENC_H * SCORE_W)
    bytes_accessed = int(
        B_pad * INPUT_SIZE * x.dtype.itemsize
        + 2 * B_pad * ZDIM * 4
        + sum(a.size * a.dtype.itemsize
              for a in (w0c, b0, w1c, b1, w2mc, b2m, w2sc, b2s)))

    # >= 32 MiB (covers v5e's 16 MiB scoped default), scaled up for big tiles.
    vmem_limit = int(min(100 * 1024 * 1024,
                         max(32 * 1024 * 1024,
                             tile_b * 8 * 1024 + (4 << 20))))

    fn = pl.pallas_call(
        functools.partial(encoder_kernel, compute_dtype=compute_dtype),
        out_shape=(jax.ShapeDtypeStruct((B_pad, ZDIM), jnp.float32),
                   jax.ShapeDtypeStruct((B_pad, ZDIM), jnp.float32)),
        grid=grid,
        in_specs=[
            pl.BlockSpec((tile_b, INPUT_SIZE), lambda i: (i, 0)),
            const_spec(w0c.shape), const_spec(b0.shape),
            const_spec(w1c.shape), const_spec(b1.shape),
            const_spec(w2mc.shape), const_spec(b2m.shape),
            const_spec(w2sc.shape), const_spec(b2s.shape),
        ],
        out_specs=(pl.BlockSpec((tile_b, ZDIM), lambda i: (i, 0)),
                   pl.BlockSpec((tile_b, ZDIM), lambda i: (i, 0))),
        compiler_params=pltpu.CompilerParams(
            dimension_semantics=("parallel",),
            vmem_limit_bytes=vmem_limit),
        cost_estimate=pl.CostEstimate(flops=flops, transcendentals=0,
                                      bytes_accessed=bytes_accessed),
    )
    mu, sigma = fn(x, w0c, b0, w1c, b1, w2mc, b2m, w2sc, b2s)
    if B_pad != B:
        mu, sigma = mu[:B], sigma[:B]
    return mu, sigma


def init_params(key):
    """Deterministic init mimicking PyTorch Linear U(-1/sqrt(fan_in), 1/sqrt(fan_in))."""
    dims = [(INPUT_SIZE, ENC_H), (ENC_H, ENC_H), (ENC_H, SCORE_W)]
    params = []
    for fan_in, fan_out in dims:
        key, kw, kb = jax.random.split(key, 3)
        bound = 1.0 / jnp.sqrt(float(fan_in))
        w = jax.random.uniform(kw, (fan_in, fan_out), jnp.float32, -bound, bound)
        b = jax.random.uniform(kb, (1, fan_out), jnp.float32, -bound, bound)
        params.append((w, b))
    return params


def encoder_forward_ref(x, params):
    """Pure-JAX reference (matches the PyTorch Encoder.forward semantics)."""
    (w0, b0), (w1, b1), (w2, b2) = params
    h = jnp.maximum(x @ w0 + b0, 0.0)
    h = jnp.maximum(h @ w1 + b1, 0.0)
    scores = h @ w2 + b2
    return scores[:, :ZDIM], scores[:, ZDIM:]


if __name__ == "__main__":
    key = jax.random.PRNGKey(0)
    k_param, k_x = jax.random.split(key)

    params = init_params(k_param)

    B = 64
    x = jax.random.normal(k_x, (B, INPUT_SIZE), jnp.float32)  # x.view(-1, input_size)

    mu_r, sigma_r = encoder_forward_ref(x, params)

    # f32 MXU path, small tile -> 2-step grid: exact vs reference.
    mu, sigma = jax.block_until_ready(
        encoder_forward(x, params, tile_b=32, compute_dtype=jnp.float32))
    assert mu.shape == (B, ZDIM) and sigma.shape == (B, ZDIM)
    assert jnp.allclose(mu, mu_r, atol=1e-5, rtol=1e-5)
    assert jnp.allclose(sigma, sigma_r, atol=1e-5, rtol=1e-5)

    # Default path (bf16 MXU inputs, f32 accumulation) -> loose tolerance.
    mu_bf, sigma_bf = jax.block_until_ready(encoder_forward(x, params))
    assert mu_bf.shape == (B, ZDIM) and sigma_bf.shape == (B, ZDIM)
    assert jnp.allclose(mu_bf, mu_r, atol=1e-1, rtol=1e-1)
    assert jnp.allclose(sigma_bf, sigma_r, atol=1e-1, rtol=1e-1)

    # Ragged batch (not a multiple of the tile) exercises the padded-grid path.
    Br = 50
    mu_p, sigma_p = jax.block_until_ready(
        encoder_forward(x[:Br], params, tile_b=32, compute_dtype=jnp.float32))
    assert mu_p.shape == (Br, ZDIM) and sigma_p.shape == (Br, ZDIM)
    assert jnp.allclose(mu_p, mu_r[:Br], atol=1e-5, rtol=1e-5)
    assert jnp.allclose(sigma_p, sigma_r[:Br], atol=1e-5, rtol=1e-5)

    print("KERNEL_OK")
</pallas_src>

<mosaic_0001>
module attributes {stable_mosaic.version = 11 : i64} {
  func.func @encoder_kernel(%arg0: i32, %arg1: memref<32x17xf32, #tpu.memory_space<vmem>>, %arg2: memref<17x32xf32, #tpu.memory_space<vmem>>, %arg3: memref<1x32xf32, #tpu.memory_space<vmem>>, %arg4: memref<32x32xf32, #tpu.memory_space<vmem>>, %arg5: memref<1x32xf32, #tpu.memory_space<vmem>>, %arg6: memref<32x8xf32, #tpu.memory_space<vmem>>, %arg7: memref<1x8xf32, #tpu.memory_space<vmem>>, %arg8: memref<32x8xf32, #tpu.memory_space<vmem>>, %arg9: memref<1x8xf32, #tpu.memory_space<vmem>>, %arg10: memref<32x8xf32, #tpu.memory_space<vmem>>, %arg11: memref<32x8xf32, #tpu.memory_space<vmem>>) attributes {dimension_semantics = [#tpu.dimension_semantics<parallel>], iteration_bounds = array<i64: 2>, scalar_prefetch = 0 : i64, scratch_operands = 0 : i64, tpu.core_type = #tpu.core_type<tc>, window_params = [{transform_indices = @transform_0, window_bounds = array<i64: 32, 17>}, {pipeline_mode = #tpu.pipeline_mode<synchronous>, transform_indices = @transform_1, window_bounds = array<i64: 17, 32>}, {pipeline_mode = #tpu.pipeline_mode<synchronous>, transform_indices = @transform_2, window_bounds = array<i64: 1, 32>}, {pipeline_mode = #tpu.pipeline_mode<synchronous>, transform_indices = @transform_3, window_bounds = array<i64: 32, 32>}, {pipeline_mode = #tpu.pipeline_mode<synchronous>, transform_indices = @transform_4, window_bounds = array<i64: 1, 32>}, {pipeline_mode = #tpu.pipeline_mode<synchronous>, transform_indices = @transform_5, window_bounds = array<i64: 32, 8>}, {pipeline_mode = #tpu.pipeline_mode<synchronous>, transform_indices = @transform_6, window_bounds = array<i64: 1, 8>}, {pipeline_mode = #tpu.pipeline_mode<synchronous>, transform_indices = @transform_7, window_bounds = array<i64: 32, 8>}, {pipeline_mode = #tpu.pipeline_mode<synchronous>, transform_indices = @transform_8, window_bounds = array<i64: 1, 8>}, {transform_indices = @transform_9, window_bounds = array<i64: 32, 8>}, {transform_indices = @transform_10, window_bounds = array<i64: 32, 8>}]} {
    %c0 = arith.constant 0 : index
    %c0_0 = arith.constant 0 : index
    %0 = vector.load %arg1[%c0, %c0_0] : memref<32x17xf32, #tpu.memory_space<vmem>>, vector<32x17xf32>
    %c0_1 = arith.constant 0 : index
    %c0_2 = arith.constant 0 : index
    %1 = vector.load %arg2[%c0_1, %c0_2] : memref<17x32xf32, #tpu.memory_space<vmem>>, vector<17x32xf32>
    %cst = arith.constant dense<0.000000e+00> : vector<32x32xf32>
    %2 = tpu.matmul %0, %1, %cst {dimension_numbers = #tpu.dot_dimension_numbers<[1], [0], [0], [1], [0, 0, 1, 1], [], []>} : vector<32x17xf32>, vector<17x32xf32>, vector<32x32xf32> -> vector<32x32xf32>
    %c0_3 = arith.constant 0 : index
    %c0_4 = arith.constant 0 : index
    %3 = vector.load %arg3[%c0_3, %c0_4] : memref<1x32xf32, #tpu.memory_space<vmem>>, vector<1x32xf32>
    %4 = vector.broadcast %3 : vector<1x32xf32> to vector<32x32xf32>
    %5 = arith.addf %2, %4 : vector<32x32xf32>
    %cst_5 = arith.constant 0.000000e+00 : f32
    %6 = vector.broadcast %cst_5 : f32 to vector<32x32xf32>
    %7 = arith.maximumf %5, %6 : vector<32x32xf32>
    %c0_6 = arith.constant 0 : index
    %c0_7 = arith.constant 0 : index
    %8 = vector.load %arg4[%c0_6, %c0_7] : memref<32x32xf32, #tpu.memory_space<vmem>>, vector<32x32xf32>
    %cst_8 = arith.constant dense<0.000000e+00> : vector<32x32xf32>
    %9 = tpu.matmul %7, %8, %cst_8 {dimension_numbers = #tpu.dot_dimension_numbers<[1], [0], [0], [1], [0, 0, 1, 1], [], []>} : vector<32x32xf32>, vector<32x32xf32>, vector<32x32xf32> -> vector<32x32xf32>
    %c0_9 = arith.constant 0 : index
    %c0_10 = arith.constant 0 : index
    %10 = vector.load %arg5[%c0_9, %c0_10] : memref<1x32xf32, #tpu.memory_space<vmem>>, vector<1x32xf32>
    %11 = vector.broadcast %10 : vector<1x32xf32> to vector<32x32xf32>
    %12 = arith.addf %9, %11 : vector<32x32xf32>
    %cst_11 = arith.constant 0.000000e+00 : f32
    %13 = vector.broadcast %cst_11 : f32 to vector<32x32xf32>
    %14 = arith.maximumf %12, %13 : vector<32x32xf32>
    %c0_12 = arith.constant 0 : index
    %c0_13 = arith.constant 0 : index
    %15 = vector.load %arg6[%c0_12, %c0_13] : memref<32x8xf32, #tpu.memory_space<vmem>>, vector<32x8xf32>
    %cst_14 = arith.constant dense<0.000000e+00> : vector<32x8xf32>
    %16 = tpu.matmul %14, %15, %cst_14 {dimension_numbers = #tpu.dot_dimension_numbers<[1], [0], [0], [1], [0, 0, 1, 1], [], []>} : vector<32x32xf32>, vector<32x8xf32>, vector<32x8xf32> -> vector<32x8xf32>
    %c0_15 = arith.constant 0 : index
    %c0_16 = arith.constant 0 : index
    %17 = vector.load %arg7[%c0_15, %c0_16] : memref<1x8xf32, #tpu.memory_space<vmem>>, vector<1x8xf32>
    %18 = vector.broadcast %17 : vector<1x8xf32> to vector<32x8xf32>
    %19 = arith.addf %16, %18 : vector<32x8xf32>
    %c0_17 = arith.constant 0 : index
    %c0_18 = arith.constant 0 : index
    %20 = vector.load %arg10[%c0_17, %c0_18] : memref<32x8xf32, #tpu.memory_space<vmem>>, vector<32x8xf32>
    tpu.vector_store %arg10[%c0_17, %c0_18], %19 {strides = array<i32>} : memref<32x8xf32, #tpu.memory_space<vmem>>, vector<32x8xf32>,
    %c0_19 = arith.constant 0 : index
    %c0_20 = arith.constant 0 : index
    %21 = vector.load %arg8[%c0_19, %c0_20] : memref<32x8xf32, #tpu.memory_space<vmem>>, vector<32x8xf32>
    %cst_21 = arith.constant dense<0.000000e+00> : vector<32x8xf32>
    %22 = tpu.matmul %14, %21, %cst_21 {dimension_numbers = #tpu.dot_dimension_numbers<[1], [0], [0], [1], [0, 0, 1, 1], [], []>} : vector<32x32xf32>, vector<32x8xf32>, vector<32x8xf32> -> vector<32x8xf32>
    %c0_22 = arith.constant 0 : index
    %c0_23 = arith.constant 0 : index
    %23 = vector.load %arg9[%c0_22, %c0_23] : memref<1x8xf32, #tpu.memory_space<vmem>>, vector<1x8xf32>
    %24 = vector.broadcast %23 : vector<1x8xf32> to vector<32x8xf32>
    %25 = arith.addf %22, %24 : vector<32x8xf32>
    %c0_24 = arith.constant 0 : index
    %c0_25 = arith.constant 0 : index
    %26 = vector.load %arg11[%c0_24, %c0_25] : memref<32x8xf32, #tpu.memory_space<vmem>>, vector<32x8xf32>
    tpu.vector_store %arg11[%c0_24, %c0_25], %25 {strides = array<i32>} : memref<32x8xf32, #tpu.memory_space<vmem>>, vector<32x8xf32>,
    return
  }
  func.func @transform_0(%arg0: i32) -> (i32, i32) {
    %c0_i32 = arith.constant 0 : i32
    %c0_i32_0 = arith.constant 0 : i32
    return %arg0, %c0_i32 : i32, i32
  }
  func.func @transform_1(%arg0: i32) -> (i32, i32) {
    %c0_i32 = arith.constant 0 : i32
    %c0_i32_0 = arith.constant 0 : i32
    %c0_i32_1 = arith.constant 0 : i32
    return %c0_i32, %c0_i32_0 : i32, i32
  }
  func.func @transform_2(%arg0: i32) -> (i32, i32) {
    %c0_i32 = arith.constant 0 : i32
    %c0_i32_0 = arith.constant 0 : i32
    %c0_i32_1 = arith.constant 0 : i32
    return %c0_i32, %c0_i32_0 : i32, i32
  }
  func.func @transform_3(%arg0: i32) -> (i32, i32) {
    %c0_i32 = arith.constant 0 : i32
    %c0_i32_0 = arith.constant 0 : i32
    %c0_i32_1 = arith.constant 0 : i32
    return %c0_i32, %c0_i32_0 : i32, i32
  }
  func.func @transform_4(%arg0: i32) -> (i32, i32) {
    %c0_i32 = arith.constant 0 : i32
    %c0_i32_0 = arith.constant 0 : i32
    %c0_i32_1 = arith.constant 0 : i32
    return %c0_i32, %c0_i32_0 : i32, i32
  }
  func.func @transform_5(%arg0: i32) -> (i32, i32) {
    %c0_i32 = arith.constant 0 : i32
    %c0_i32_0 = arith.constant 0 : i32
    %c0_i32_1 = arith.constant 0 : i32
    return %c0_i32, %c0_i32_0 : i32, i32
  }
  func.func @transform_6(%arg0: i32) -> (i32, i32) {
    %c0_i32 = arith.constant 0 : i32
    %c0_i32_0 = arith.constant 0 : i32
    %c0_i32_1 = arith.constant 0 : i32
    return %c0_i32, %c0_i32_0 : i32, i32
  }
  func.func @transform_7(%arg0: i32) -> (i32, i32) {
    %c0_i32 = arith.constant 0 : i32
    %c0_i32_0 = arith.constant 0 : i32
    %c0_i32_1 = arith.constant 0 : i32
    return %c0_i32, %c0_i32_0 : i32, i32
  }
  func.func @transform_8(%arg0: i32) -> (i32, i32) {
    %c0_i32 = arith.constant 0 : i32
    %c0_i32_0 = arith.constant 0 : i32
    %c0_i32_1 = arith.constant 0 : i32
    return %c0_i32, %c0_i32_0 : i32, i32
  }
  func.func @transform_9(%arg0: i32) -> (i32, i32) {
    %c0_i32 = arith.constant 0 : i32
    %c0_i32_0 = arith.constant 0 : i32
    return %arg0, %c0_i32 : i32, i32
  }
  func.func @transform_10(%arg0: i32) -> (i32, i32) {
    %c0_i32 = arith.constant 0 : i32
    %c0_i32_0 = arith.constant 0 : i32
    return %arg0, %c0_i32 : i32, i32
  }
}

</mosaic_0001>

<llo_original>
// kernel: tpu_custom_call.1
$region0: #{tpu_custom_call.1}
  #allocation0 [shape = 'u32[]', space=smem, size = 0x4, offset = 0x4, fixed_abs, tag = 'smem constant byte address 0x4 - core index']
  #allocation1 [shape = 'u32[144,128]{1,0:T(1,128)}', space=vmem, size = 0x12000, scoped, tag = 'internal scratch']
  %s0 = inlined_call_operand.vmem [shape: f32[64,17], index: 0, kind: input, shape index: {}]
  %s1 = inlined_call_operand.vmem [shape: f32[17,32], index: 1, kind: input, shape index: {}]
  %s2 = inlined_call_operand.vmem [shape: f32[1,32], index: 2, kind: input, shape index: {}]
  %s3 = inlined_call_operand.vmem [shape: f32[32,32], index: 3, kind: input, shape index: {}]
  %s4 = inlined_call_operand.vmem [shape: f32[1,32], index: 4, kind: input, shape index: {}]
  %s5 = inlined_call_operand.vmem [shape: f32[32,8], index: 5, kind: input, shape index: {}]
  %s6 = inlined_call_operand.vmem [shape: f32[1,8], index: 6, kind: input, shape index: {}]
  %s7 = inlined_call_operand.vmem [shape: f32[32,8], index: 7, kind: input, shape index: {}]
  %s8 = inlined_call_operand.vmem [shape: f32[1,8], index: 8, kind: input, shape index: {}]
  %s9 = inlined_call_operand.vmem [shape: f32[64,8], index: 9, kind: output, shape index: {0}]
  %s10 = inlined_call_operand.vmem [shape: f32[64,8], index: 10, kind: output, shape index: {1}]
  %11 = xla_tuple %s9, %s10
  %s12 = sld [smem:[#allocation0]]
  $region77: #{tpu_custom_call.1} parent=0
    _
  %s14 = ssub.s32 1, %s12
  %s15 = scalar_select 0, %s14, %s12
  loop: start=0, step=1, limit=4
  $region2: #{tpu_custom_call.1} parent=0 // loop_pre_header
    _
  $region3: #{tpu_custom_call.1} parent=0 // loop_header
    %s17 = sphi 0, %s21
    %p18 = scmp.ge.s32.totalorder %s17, 4
    %s27 = sphi 0, %s29
    %s30 = sphi 0, %s27
    %s31 = sphi 0, %s30
    %s47 = sphi 0, %s31
    %s51 = sphi 0, %s51
    %s53 = sphi 0, %s51
    %s54 = sphi 0, %s53
    %s68 = sphi 0, %s54
    %s72 = sphi 0, %s72
    %s74 = sphi 0, %s72
    %s75 = sphi 0, %s74
    %s89 = sphi 0, %s75
    %s93 = sphi 0, %s93
    %s95 = sphi 0, %s93
    %s96 = sphi 0, %s95
    %s110 = sphi 0, %s96
    %s114 = sphi 0, %s114
    %s116 = sphi 0, %s114
    %s117 = sphi 0, %s116
    %s131 = sphi 0, %s117
    %s135 = sphi 0, %s135
    %s137 = sphi 0, %s135
    %s138 = sphi 0, %s137
    %s152 = sphi 0, %s138
    %s156 = sphi 0, %s156
    %s158 = sphi 0, %s156
    %s159 = sphi 0, %s158
    %s173 = sphi 0, %s159
    %s177 = sphi 0, %s177
    %s179 = sphi 0, %s177
    %s180 = sphi 0, %s179
    %s194 = sphi 0, %s180
    %s198 = sphi 0, %s198
    %s200 = sphi 0, %s198
    %s201 = sphi 0, %s200
    %s215 = sphi 0, %s201
    %s221 = sphi 0, %s223
    %s224 = sphi 0, %s221
    %s225 = sphi 0, %s224
    %s241 = sphi 0, %s225
    %s247 = sphi 0, %s249
    %s250 = sphi 0, %s247
    %s251 = sphi 0, %s250
    %s267 = sphi 0, %s251
  $region4: #{tpu_custom_call.1} parent=0 // loop_header_branch
    %20 = sbr.rel (%p18) target = $region8
  $region5: #{tpu_custom_call.1} parent=0 // loop_body
    %s22 = ssub.s32 %s17, 1
    %s23 = ssub.s32 %s17, 2
    %s24 = sadd.s32 %s17, 1
    %s25 = ssub.s32 %s17, %s24
    %p26 = scmp.eq.s32.totalorder %s25, 0
    %s28 = sadd.s32 %s27, 1
    %s29 = scalar_select %p26, %s27, %s28
    %p32 = pneg %p26
    %p33 = scmp.eq.s32.totalorder %s17, 1
    %p34 = por %p32, %p33
    %p35 = scmp.ne.s32.totalorder %s27, %s30
    %p36 = scmp.eq.s32.totalorder %s17, 0
    %p37 = por %p35, %p36
    %p38 = scmp.ne.s32.totalorder %s27, %s30
    %p39 = scmp.eq.s32.totalorder %s22, 1
    %p40 = por %p38, %p39
    %p41 = scmp.ne.s32.totalorder %s30, %s31
    %p42 = scmp.eq.s32.totalorder %s22, 0
    %p43 = por %p41, %p42
    %p44 = scmp.ne.s32.totalorder %s30, %s31
    %p45 = scmp.eq.s32.totalorder %s23, 1
    %p46 = por %p44, %p45
    %p48 = scmp.ne.s32.totalorder %s31, %s47
    %p49 = scmp.eq.s32.totalorder %s23, 0
    %p50 = por %p48, %p49
    %s52 = sadd.s32 %s51, 1
    %p55 = scmp.eq.s32.totalorder %s17, 1
    %p56 = scmp.ne.s32.totalorder %s51, %s53
    %p57 = scmp.eq.s32.totalorder %s17, 0
    %p58 = por %p56, %p57
    %p59 = scmp.ne.s32.totalorder %s51, %s53
    %p60 = scmp.eq.s32.totalorder %s22, 1
    %p61 = por %p59, %p60
    %p62 = scmp.ne.s32.totalorder %s53, %s54
    %p63 = scmp.eq.s32.totalorder %s22, 0
    %p64 = por %p62, %p63
    %p65 = scmp.ne.s32.totalorder %s53, %s54
    %p66 = scmp.eq.s32.totalorder %s23, 1
    %p67 = por %p65, %p66
    %p69 = scmp.ne.s32.totalorder %s54, %s68
    %p70 = scmp.eq.s32.totalorder %s23, 0
    %p71 = por %p69, %p70
    %s73 = sadd.s32 %s72, 1
    %p76 = scmp.eq.s32.totalorder %s17, 1
    %p77 = scmp.ne.s32.totalorder %s72, %s74
    %p78 = scmp.eq.s32.totalorder %s17, 0
    %p79 = por %p77, %p78
    %p80 = scmp.ne.s32.totalorder %s72, %s74
    %p81 = scmp.eq.s32.totalorder %s22, 1
    %p82 = por %p80, %p81
    %p83 = scmp.ne.s32.totalorder %s74, %s75
    %p84 = scmp.eq.s32.totalorder %s22, 0
    %p85 = por %p83, %p84
    %p86 = scmp.ne.s32.totalorder %s74, %s75
    %p87 = scmp.eq.s32.totalorder %s23, 1
    %p88 = por %p86, %p87
    %p90 = scmp.ne.s32.totalorder %s75, %s89
    %p91 = scmp.eq.s32.totalorder %s23, 0
    %p92 = por %p90, %p91
    %s94 = sadd.s32 %s93, 1
    %p97 = scmp.eq.s32.totalorder %s17, 1
    %p98 = scmp.ne.s32.totalorder %s93, %s95
    %p99 = scmp.eq.s32.totalorder %s17, 0
    %p100 = por %p98, %p99
    %p101 = scmp.ne.s32.totalorder %s93, %s95
    %p102 = scmp.eq.s32.totalorder %s22, 1
    %p103 = por %p101, %p102
    %p104 = scmp.ne.s32.totalorder %s95, %s96
    %p105 = scmp.eq.s32.totalorder %s22, 0
    %p106 = por %p104, %p105
    %p107 = scmp.ne.s32.totalorder %s95, %s96
    %p108 = scmp.eq.s32.totalorder %s23, 1
    %p109 = por %p107, %p108
    %p111 = scmp.ne.s32.totalorder %s96, %s110
    %p112 = scmp.eq.s32.totalorder %s23, 0
    %p113 = por %p111, %p112
    %s115 = sadd.s32 %s114, 1
    %p118 = scmp.eq.s32.totalorder %s17, 1
    %p119 = scmp.ne.s32.totalorder %s114, %s116
    %p120 = scmp.eq.s32.totalorder %s17, 0
    %p121 = por %p119, %p120
    %p122 = scmp.ne.s32.totalorder %s114, %s116
    %p123 = scmp.eq.s32.totalorder %s22, 1
    %p124 = por %p122, %p123
    %p125 = scmp.ne.s32.totalorder %s116, %s117
    %p126 = scmp.eq.s32.totalorder %s22, 0
    %p127 = por %p125, %p126
    %p128 = scmp.ne.s32.totalorder %s116, %s117
    %p129 = scmp.eq.s32.totalorder %s23, 1
    %p130 = por %p128, %p129
    %p132 = scmp.ne.s32.totalorder %s117, %s131
    %p133 = scmp.eq.s32.totalorder %s23, 0
    %p134 = por %p132, %p133
    %s136 = sadd.s32 %s135, 1
    %p139 = scmp.eq.s32.totalorder %s17, 1
    %p140 = scmp.ne.s32.totalorder %s135, %s137
    %p141 = scmp.eq.s32.totalorder %s17, 0
    %p142 = por %p140, %p141
    %p143 = scmp.ne.s32.totalorder %s135, %s137
    %p144 = scmp.eq.s32.totalorder %s22, 1
    %p145 = por %p143, %p144
    %p146 = scmp.ne.s32.totalorder %s137, %s138
    %p147 = scmp.eq.s32.totalorder %s22, 0
    %p148 = por %p146, %p147
    %p149 = scmp.ne.s32.totalorder %s137, %s138
    %p150 = scmp.eq.s32.totalorder %s23, 1
    %p151 = por %p149, %p150
    %p153 = scmp.ne.s32.totalorder %s138, %s152
    %p154 = scmp.eq.s32.totalorder %s23, 0
    %p155 = por %p153, %p154
    %s157 = sadd.s32 %s156, 1
    %p160 = scmp.eq.s32.totalorder %s17, 1
    %p161 = scmp.ne.s32.totalorder %s156, %s158
    %p162 = scmp.eq.s32.totalorder %s17, 0
    %p163 = por %p161, %p162
    %p164 = scmp.ne.s32.totalorder %s156, %s158
    %p165 = scmp.eq.s32.totalorder %s22, 1
    %p166 = por %p164, %p165
    %p167 = scmp.ne.s32.totalorder %s158, %s159
    %p168 = scmp.eq.s32.totalorder %s22, 0
    %p169 = por %p167, %p168
    %p170 = scmp.ne.s32.totalorder %s158, %s159
    %p171 = scmp.eq.s32.totalorder %s23, 1
    %p172 = por %p170, %p171
    %p174 = scmp.ne.s32.totalorder %s159, %s173
    %p175 = scmp.eq.s32.totalorder %s23, 0
    %p176 = por %p174, %p175
    %s178 = sadd.s32 %s177, 1
    %p181 = scmp.eq.s32.totalorder %s17, 1
    %p182 = scmp.ne.s32.totalorder %s177, %s179
    %p183 = scmp.eq.s32.totalorder %s17, 0
    %p184 = por %p182, %p183
    %p185 = scmp.ne.s32.totalorder %s177, %s179
    %p186 = scmp.eq.s32.totalorder %s22, 1
    %p187 = por %p185, %p186
    %p188 = scmp.ne.s32.totalorder %s179, %s180
    %p189 = scmp.eq.s32.totalorder %s22, 0
    %p190 = por %p188, %p189
    %p191 = scmp.ne.s32.totalorder %s179, %s180
    %p192 = scmp.eq.s32.totalorder %s23, 1
    %p193 = por %p191, %p192
    %p195 = scmp.ne.s32.totalorder %s180, %s194
    %p196 = scmp.eq.s32.totalorder %s23, 0
    %p197 = por %p195, %p196
    %s199 = sadd.s32 %s198, 1
    %p202 = scmp.eq.s32.totalorder %s17, 1
    %p203 = scmp.ne.s32.totalorder %s198, %s200
    %p204 = scmp.eq.s32.totalorder %s17, 0
    %p205 = por %p203, %p204
    %p206 = scmp.ne.s32.totalorder %s198, %s200
    %p207 = scmp.eq.s32.totalorder %s22, 1
    %p208 = por %p206, %p207
    %p209 = scmp.ne.s32.totalorder %s200, %s201
    %p210 = scmp.eq.s32.totalorder %s22, 0
    %p211 = por %p209, %p210
    %p212 = scmp.ne.s32.totalorder %s200, %s201
    %p213 = scmp.eq.s32.totalorder %s23, 1
    %p214 = por %p212, %p213
    %p216 = scmp.ne.s32.totalorder %s201, %s215
    %p217 = scmp.eq.s32.totalorder %s23, 0
    %p218 = por %p216, %p217
    %s219 = ssub.s32 %s17, %s24
    %p220 = scmp.eq.s32.totalorder %s219, 0
    %s222 = sadd.s32 %s221, 1
    %s223 = scalar_select %p220, %s221, %s222
    %p226 = pneg %p220
    %p227 = scmp.eq.s32.totalorder %s17, 1
    %p228 = por %p226, %p227
    %p229 = scmp.ne.s32.totalorder %s221, %s224
    %p230 = scmp.eq.s32.totalorder %s17, 0
    %p231 = por %p229, %p230
    %p232 = scmp.ne.s32.totalorder %s221, %s224
    %p233 = scmp.eq.s32.totalorder %s22, 1
    %p234 = por %p232, %p233
    %p235 = scmp.ne.s32.totalorder %s224, %s225
    %p236 = scmp.eq.s32.totalorder %s22, 0
    %p237 = por %p235, %p236
    %p238 = scmp.ne.s32.totalorder %s224, %s225
    %p239 = scmp.eq.s32.totalorder %s23, 1
    %p240 = por %p238, %p239
    %p242 = scmp.ne.s32.totalorder %s225, %s241
    %p243 = scmp.eq.s32.totalorder %s23, 0
    %p244 = por %p242, %p243
    %s245 = ssub.s32 %s17, %s24
    %p246 = scmp.eq.s32.totalorder %s245, 0
    %s248 = sadd.s32 %s247, 1
    %s249 = scalar_select %p246, %s247, %s248
    %p252 = pneg %p246
    %p253 = scmp.eq.s32.totalorder %s17, 1
    %p254 = por %p252, %p253
    %p255 = scmp.ne.s32.totalorder %s247, %s250
    %p256 = scmp.eq.s32.totalorder %s17, 0
    %p257 = por %p255, %p256
    %p258 = scmp.ne.s32.totalorder %s247, %s250
    %p259 = scmp.eq.s32.totalorder %s22, 1
    %p260 = por %p258, %p259
    %p261 = scmp.ne.s32.totalorder %s250, %s251
    %p262 = scmp.eq.s32.totalorder %s22, 0
    %p263 = por %p261, %p262
    %p264 = scmp.ne.s32.totalorder %s250, %s251
    %p265 = scmp.eq.s32.totalorder %s23, 1
    %p266 = por %p264, %p265
    %p268 = scmp.ne.s32.totalorder %s251, %s267
    %p269 = scmp.eq.s32.totalorder %s23, 0
    %p270 = por %p268, %p269
    %p271 = scmp.le.s32.totalorder 1, %s17
    %p272 = scmp.lt.s32.totalorder %s17, 3
    %p273 = pnand %p271, %p272
    %p274 = pneg %p273
    // Predicated region
    $region9: #{tpu_custom_call.1} parent=5 // pred_check
      _
    $region10: #{tpu_custom_call.1} parent=5 // pred_check_branch
      %276 = sbr.rel (%p273) target = $region12
    $region11: #{tpu_custom_call.1} parent=5 // pred_region
      %s277 = ssub.s32 %s17, 1
      // Predicated region
      $region13: #{tpu_custom_call.1} parent=11 // pred_check
        %p278 = pneg %p64
      $region14: #{tpu_custom_call.1} parent=11 // pred_check_branch
        %280 = sbr.rel (%p278) target = $region16
      $region15: #{tpu_custom_call.1} parent=11 // pred_region
        _
      $region16: #{tpu_custom_call.1} parent=11 // pred_fallthru
        _
      // Predicated region
      $region17: #{tpu_custom_call.1} parent=11 // pred_check
        %p281 = pneg %p85
      $region18: #{tpu_custom_call.1} parent=11 // pred_check_branch
        %283 = sbr.rel (%p281) target = $region20
      $region19: #{tpu_custom_call.1} parent=11 // pred_region
        _
      $region20: #{tpu_custom_call.1} parent=11 // pred_fallthru
        _
      // Predicated region
      $region21: #{tpu_custom_call.1} parent=11 // pred_check
        %p284 = pneg %p106
      $region22: #{tpu_custom_call.1} parent=11 // pred_check_branch
        %286 = sbr.rel (%p284) target = $region24
      $region23: #{tpu_custom_call.1} parent=11 // pred_region
        _
      $region24: #{tpu_custom_call.1} parent=11 // pred_fallthru
        _
      // Predicated region
      $region25: #{tpu_custom_call.1} parent=11 // pred_check
        %p287 = pneg %p127
      $region26: #{tpu_custom_call.1} parent=11 // pred_check_branch
        %289 = sbr.rel (%p287) target = $region28
      $region27: #{tpu_custom_call.1} parent=11 // pred_region
        _
      $region28: #{tpu_custom_call.1} parent=11 // pred_fallthru
        _
      // Predicated region
      $region29: #{tpu_custom_call.1} parent=11 // pred_check
        %p290 = pneg %p148
      $region30: #{tpu_custom_call.1} parent=11 // pred_check_branch
        %292 = sbr.rel (%p290) target = $region32
      $region31: #{tpu_custom_call.1} parent=11 // pred_region
        _
      $region32: #{tpu_custom_call.1} parent=11 // pred_fallthru
        _
      // Predicated region
      $region33: #{tpu_custom_call.1} parent=11 // pred_check
        %p293 = pneg %p169
      $region34: #{tpu_custom_call.1} parent=11 // pred_check_branch
        %295 = sbr.rel (%p293) target = $region36
      $region35: #{tpu_custom_call.1} parent=11 // pred_region
        _
      $region36: #{tpu_custom_call.1} parent=11 // pred_fallthru
        _
      // Predicated region
      $region37: #{tpu_custom_call.1} parent=11 // pred_check
        %p296 = pneg %p190
      $region38: #{tpu_custom_call.1} parent=11 // pred_check_branch
        %298 = sbr.rel (%p296) target = $region40
      $region39: #{tpu_custom_call.1} parent=11 // pred_region
        _
      $region40: #{tpu_custom_call.1} parent=11 // pred_fallthru
        _
      // Predicated region
      $region41: #{tpu_custom_call.1} parent=11 // pred_check
        %p299 = pneg %p211
      $region42: #{tpu_custom_call.1} parent=11 // pred_check_branch
        %301 = sbr.rel (%p299) target = $region44
      $region43: #{tpu_custom_call.1} parent=11 // pred_region
        _
      $region44: #{tpu_custom_call.1} parent=11 // pred_fallthru
        _
    $region12: #{tpu_custom_call.1} parent=5 // pred_fallthru
      _
    %p302 = scmp.lt.s32.totalorder %s17, 2
    // Predicated region
    $region45: #{tpu_custom_call.1} parent=5 // pred_check
      %p303 = pneg %p302
    $region46: #{tpu_custom_call.1} parent=5 // pred_check_branch
      %305 = sbr.rel (%p303) target = $region48
    $region47: #{tpu_custom_call.1} parent=5 // pred_region
      // Predicated region
      $region49: #{tpu_custom_call.1} parent=47 // pred_check
        %p306 = pneg %p37
      $region50: #{tpu_custom_call.1} parent=47 // pred_check_branch
        %308 = sbr.rel (%p306) target = $region52
      $region51: #{tpu_custom_call.1} parent=47 // pred_region
        %s309 = smul.u32 4, %s17
        %p310 = scmp.lt.s32.totalorder %s309, 7
        %s311 = scalar_select %p310, %s309, 7
        %s312 = smul.addr %s311, 8
        %s313 = scalar_lea.vmem %s0, %s312
        %s314 = smul.u32 4, %s17
      $region52: #{tpu_custom_call.1} parent=47 // pred_fallthru
        _
    $region48: #{tpu_custom_call.1} parent=5 // pred_fallthru
      _
    %p315 = scmp.le.s32.totalorder 1, %s17
    %p316 = scmp.lt.s32.totalorder %s17, 3
    %p317 = pnand %p315, %p316
    %p318 = pneg %p317
    // Predicated region
    $region53: #{tpu_custom_call.1} parent=5 // pred_check
      _
    $region54: #{tpu_custom_call.1} parent=5 // pred_check_branch
      %320 = sbr.rel (%p317) target = $region56
    $region55: #{tpu_custom_call.1} parent=5 // pred_region
      %s321 = ssub.s32 %s17, 1
      %s322 = smul.u32 4, %s22
      %p323 = scmp.lt.s32.totalorder %s322, 7
      %s324 = scalar_select %p323, %s322, 7
      %s325 = smul.addr %s324, 8
      %s326 = scalar_lea.vmem %s0, %s325
      %p327 = pneg %p43
      %p328 = pneg %p40
      %p329 = pneg %p64
      %p330 = pneg %p61
      %p331 = pneg %p85
      %p332 = pneg %p82
      %p333 = pneg %p106
      %p334 = pneg %p103
      %p335 = pneg %p127
      %p336 = pneg %p124
      %p337 = pneg %p148
      %p338 = pneg %p145
      %p339 = pneg %p169
      %p340 = pneg %p166
      %p341 = pneg %p190
      %p342 = pneg %p187
      %p343 = pneg %p211
      %p344 = pneg %p208
      %p345 = pneg %p237
      %p346 = pneg %p234
      %s347 = smul.u32 4, %s22
      %p348 = scmp.lt.s32.totalorder %s347, 7
      %s349 = scalar_select %p348, %s347, 7
      %s350 = smul.addr %s349, 8
      %s351 = scalar_lea.vmem %s9, %s350
      %p352 = pneg %p263
      %p353 = pneg %p260
      %s354 = smul.u32 4, %s22
      %p355 = scmp.lt.s32.totalorder %s354, 7
      %s356 = scalar_select %p355, %s354, 7
      %s357 = smul.addr %s356, 8
      %s358 = scalar_lea.vmem %s10, %s357
      %s359 = smul.u32 4, %s22
      %p360 = scmp.lt.s32.totalorder %s359, 7
      %s361 = scalar_select %p360, %s359, 7
      %s362 = smul.addr %s361, 8
      %s363 = scalar_lea.vmem %s0, %s362
      %s364 = smul.u32 4, %s22
      %s365 = smul.u32 4, %s22
      %p366 = scmp.lt.s32.totalorder %s365, 7
      %s367 = scalar_select %p366, %s365, 7
      %s368 = smul.addr %s367, 8
      %s369 = scalar_lea.vmem %s9, %s368
      %s370 = smul.u32 4, %s22
      %s371 = smul.u32 4, %s22
      %p372 = scmp.lt.s32.totalorder %s371, 7
      %s373 = scalar_select %p372, %s371, 7
      %s374 = smul.addr %s373, 8
      %s375 = scalar_lea.vmem %s10, %s374
      %s376 = smul.u32 4, %s22
      %v377 = vld [vmem:[%s363] sm:$0xff]
      %v378 = vld [vmem:[%s363 + $0x8] sm:$0xff]
      %v379 = vld [vmem:[%s363 + $0x10] sm:$0xff]
      %v380 = vld [vmem:[%s363 + $0x18] sm:$0xff]
      %v381 = vld [vmem:[%s1] sm:$0xff]
      %v382 = vld [vmem:[%s1 + $0x8] sm:$0xff]
      %v383 = vld [vmem:[%s1 + $0x10] sm:$0x1]
      %v384 = vld [vmem:[%s2] sm:$0x1]
      %v386 = vlaneseq
      %v387 = vshrl.u32 %v386, 7
      %v388 = vsub.s32 0, %v387
      %v389 = vrot.slane %v384, %v388
      %vm391 = vcmask 138240
      %v393 = vsel %vm391, %v377, 0
      %v396 = vsel %vm391, %v378, 0
      %v399 = vsel %vm391, %v379, 0
      %v402 = vsel %vm391, %v380, 0
      %vm404 = vcmask 1040384
      %v406 = vsel %vm404, %v383, 0
      %408 = vmatprep.subr.mxu0 0.0
      %409 = vmatpush1.msra.mxu0 %v381
      %410 = vmatprep.subr.mxu0 0.0
      %411 = vmatpush1.msra.mxu0 %v382
      %412 = vmatprep.subr.mxu0 0.0
      %413 = vmatpush1.msra.mxu0 %v406
      %414 = vmatprep.subr.mxu0 0.0
      %415 = vmatpush1.msra.mxu0 0.0
      %416 = vmatprep.subr.mxu0 0.0
      %417 = vmatpush1.msra.mxu0 0.0
      %418 = vmatprep.subr.mxu0 0.0
      %419 = vmatpush1.msra.mxu0 0.0
      %420 = vmatprep.subr.mxu0 0.0
      %421 = vmatpush1.msra.mxu0 0.0
      %422 = vmatprep.subr.mxu0 0.0
      %423 = vmatpush1.msra.mxu0 0.0
      %424 = vmatprep.subr.mxu0 0.0
      %425 = vmatpush1.msra.mxu0 0.0
      %426 = vmatprep.subr.mxu0 0.0
      %427 = vmatpush1.msra.mxu0 0.0
      %428 = vmatprep.subr.mxu0 0.0
      %429 = vmatpush1.msra.mxu0 0.0
      %430 = vmatprep.subr.mxu0 0.0
      %431 = vmatpush1.msra.mxu0 0.0
      %432 = vmatprep.subr.mxu0 0.0
      %433 = vmatpush1.msra.mxu0 0.0
      %434 = vmatprep.subr.mxu0 0.0
      %435 = vmatpush1.msra.mxu0 0.0
      %436 = vmatprep.subr.mxu0 0.0
      %437 = vmatpush1.msra.mxu0 0.0
      %438 = vmatprep.subr.mxu0 0.0
      %439 = vmatpush1.msra.mxu0 0.0
      %440 = vmatprep.subr.mxu0 0.0
      %441 = vmatpush1.msra.mxu0 0.0
      %442 = vmatprep.subr.mxu0 0.0
      %443 = vmatpush1.msra.mxu0 0.0
      %444 = vmatprep.subr.mxu0 0.0
      %445 = vmatpush1.msra.mxu0 0.0
      %446 = vmatprep.subr.mxu0 0.0
      %447 = vmatpush1.msra.mxu0 0.0
      %448 = vmatprep.subr.mxu0 0.0
      %449 = vmatpush1.msra.mxu0 0.0
      %450 = vmatprep.subr.mxu0 0.0
      %451 = vmatpush1.msra.mxu0 0.0
      %452 = vmatprep.subr.mxu0 0.0
      %453 = vmatpush1.msra.mxu0 0.0
      %454 = vmatprep.subr.mxu0 0.0
      %455 = vmatpush1.msra.mxu0 0.0
      %456 = vmatprep.subr.mxu0 0.0
      %457 = vmatpush1.msra.mxu0 0.0
      %458 = vmatprep.subr.mxu0 0.0
      %459 = vmatpush1.msra.mxu0 0.0
      %460 = vmatprep.subr.mxu0 0.0
      %461 = vmatpush1.msra.mxu0 0.0
      %462 = vmatprep.subr.mxu0 0.0
      %463 = vmatpush1.msra.mxu0 0.0
      %464 = vmatprep.subr.mxu0 0.0
      %465 = vmatpush1.msra.mxu0 0.0
      %466 = vmatprep.subr.mxu0 0.0
      %467 = vmatpush1.msra.mxu0 0.0
      %468 = vmatprep.subr.mxu0 0.0
      %469 = vmatpush1.msra.mxu0 0.0
      %470 = vmatprep.subr.mxu0 0.0
      %471 = vmatpush1.msra.mxu0 0.0
      %472 = vmatprep.mubr.f32.mxu0 0.0
      %473 = vmatmul.mubr.f32.gmra.mrb[0].mxu0 %v393
      %v474 = vpop.f32.mrb[0].mxu0
      %v475 = vadd.f32 %v389, %v474
      %v476 = vpop.f32.mrb[0].mxu0
      %477 = vmatprep.mubr.f32.mxu0 0.0
      %478 = vmatmul.mubr.f32.gmra.mrb[0].mxu0 %v396
      %v479 = vpop.f32.mrb[0].mxu0
      %v480 = vadd.f32 %v389, %v479
      %v481 = vpop.f32.mrb[0].mxu0
      %482 = vmatprep.mubr.f32.mxu0 0.0
      %483 = vmatmul.mubr.f32.gmra.mrb[0].mxu0 %v399
      %v484 = vpop.f32.mrb[0].mxu0
      %v485 = vadd.f32 %v389, %v484
      %v486 = vpop.f32.mrb[0].mxu0
      %487 = vmatprep.mubr.f32.mxu0 0.0
      %488 = vmatmul.mubr.f32.gmra.mrb[0].mxu0 %v402
      %v489 = vpop.f32.mrb[0].mxu0
      %v490 = vadd.f32 %v389, %v489
      %v491 = vpop.f32.mrb[0].mxu0
      %492 = vdwg.mxu0
      %v493 = vmax.f32 %v475, 0.0
      %v494 = vmax.f32 %v480, 0.0
      %v495 = vmax.f32 %v485, 0.0
      %v496 = vmax.f32 %v490, 0.0
      %v497 = vld [vmem:[%s3] sm:$0xff]
      %v498 = vld [vmem:[%s3 + $0x8] sm:$0xff]
      %v499 = vld [vmem:[%s3 + $0x10] sm:$0xff]
      %v500 = vld [vmem:[%s3 + $0x18] sm:$0xff]
      %v501 = vld [vmem:[%s4] sm:$0x1]
      %v503 = vlaneseq
      %v504 = vshrl.u32 %v503, 7
      %v505 = vsub.s32 0, %v504
      %v506 = vrot.slane %v501, %v505
      %vm508 = vcmask 261120
      %v510 = vsel %vm508, %v493, 0
      %v513 = vsel %vm508, %v494, 0
      %v516 = vsel %vm508, %v495, 0
      %v519 = vsel %vm508, %v496, 0
      %521 = vmatprep.subr.mxu0 0.0
      %522 = vmatpush1.msra.mxu0 %v497
      %523 = vmatprep.subr.mxu0 0.0
      %524 = vmatpush1.msra.mxu0 %v498
      %525 = vmatprep.subr.mxu0 0.0
      %526 = vmatpush1.msra.mxu0 %v499
      %527 = vmatprep.subr.mxu0 0.0
      %528 = vmatpush1.msra.mxu0 %v500
      %529 = vmatprep.subr.mxu0 0.0
      %530 = vmatpush1.msra.mxu0 0.0
      %531 = vmatprep.subr.mxu0 0.0
      %532 = vmatpush1.msra.mxu0 0.0
      %533 = vmatprep.subr.mxu0 0.0
      %534 = vmatpush1.msra.mxu0 0.0
      %535 = vmatprep.subr.mxu0 0.0
      %536 = vmatpush1.msra.mxu0 0.0
      %537 = vmatprep.subr.mxu0 0.0
      %538 = vmatpush1.msra.mxu0 0.0
      %539 = vmatprep.subr.mxu0 0.0
      %540 = vmatpush1.msra.mxu0 0.0
      %541 = vmatprep.subr.mxu0 0.0
      %542 = vmatpush1.msra.mxu0 0.0
      %543 = vmatprep.subr.mxu0 0.0
      %544 = vmatpush1.msra.mxu0 0.0
      %545 = vmatprep.subr.mxu0 0.0
      %546 = vmatpush1.msra.mxu0 0.0
      %547 = vmatprep.subr.mxu0 0.0
      %548 = vmatpush1.msra.mxu0 0.0
      %549 = vmatprep.subr.mxu0 0.0
      %550 = vmatpush1.msra.mxu0 0.0
      %551 = vmatprep.subr.mxu0 0.0
      %552 = vmatpush1.msra.mxu0 0.0
      %553 = vmatprep.subr.mxu0 0.0
      %554 = vmatpush1.msra.mxu0 0.0
      %555 = vmatprep.subr.mxu0 0.0
      %556 = vmatpush1.msra.mxu0 0.0
      %557 = vmatprep.subr.mxu0 0.0
      %558 = vmatpush1.msra.mxu0 0.0
      %559 = vmatprep.subr.mxu0 0.0
      %560 = vmatpush1.msra.mxu0 0.0
      %561 = vmatprep.subr.mxu0 0.0
      %562 = vmatpush1.msra.mxu0 0.0
      %563 = vmatprep.subr.mxu0 0.0
      %564 = vmatpush1.msra.mxu0 0.0
      %565 = vmatprep.subr.mxu0 0.0
      %566 = vmatpush1.msra.mxu0 0.0
      %567 = vmatprep.subr.mxu0 0.0
      %568 = vmatpush1.msra.mxu0 0.0
      %569 = vmatprep.subr.mxu0 0.0
      %570 = vmatpush1.msra.mxu0 0.0
      %571 = vmatprep.subr.mxu0 0.0
      %572 = vmatpush1.msra.mxu0 0.0
      %573 = vmatprep.subr.mxu0 0.0
      %574 = vmatpush1.msra.mxu0 0.0
      %575 = vmatprep.subr.mxu0 0.0
      %576 = vmatpush1.msra.mxu0 0.0
      %577 = vmatprep.subr.mxu0 0.0
      %578 = vmatpush1.msra.mxu0 0.0
      %579 = vmatprep.subr.mxu0 0.0
      %580 = vmatpush1.msra.mxu0 0.0
      %581 = vmatprep.subr.mxu0 0.0
      %582 = vmatpush1.msra.mxu0 0.0
      %583 = vmatprep.subr.mxu0 0.0
      %584 = vmatpush1.msra.mxu0 0.0
      %585 = vmatprep.mubr.f32.mxu0 0.0
      %586 = vmatmul.mubr.f32.gmra.mrb[0].mxu0 %v510
      %v587 = vpop.f32.mrb[0].mxu0
      %v588 = vadd.f32 %v506, %v587
      %v589 = vpop.f32.mrb[0].mxu0
      %590 = vmatprep.mubr.f32.mxu0 0.0
      %591 = vmatmul.mubr.f32.gmra.mrb[0].mxu0 %v513
      %v592 = vpop.f32.mrb[0].mxu0
      %v593 = vadd.f32 %v506, %v592
      %v594 = vpop.f32.mrb[0].mxu0
      %595 = vmatprep.mubr.f32.mxu0 0.0
      %596 = vmatmul.mubr.f32.gmra.mrb[0].mxu0 %v516
      %v597 = vpop.f32.mrb[0].mxu0
      %v598 = vadd.f32 %v506, %v597
      %v599 = vpop.f32.mrb[0].mxu0
      %600 = vmatprep.mubr.f32.mxu0 0.0
      %601 = vmatmul.mubr.f32.gmra.mrb[0].mxu0 %v519
      %v602 = vpop.f32.mrb[0].mxu0
      %v603 = vadd.f32 %v506, %v602
      %v604 = vpop.f32.mrb[0].mxu0
      %605 = vdwg.mxu0
      %v606 = vmax.f32 %v588, 0.0
      %v607 = vmax.f32 %v593, 0.0
      %v608 = vmax.f32 %v598, 0.0
      %v609 = vmax.f32 %v603, 0.0
      %v610 = vld [vmem:[%s5] sm:$0xff]
      %v611 = vld [vmem:[%s5 + $0x8] sm:$0xff]
      %v612 = vld [vmem:[%s5 + $0x10] sm:$0xff]
      %v613 = vld [vmem:[%s5 + $0x18] sm:$0xff]
      %v614 = vld [vmem:[%s6] sm:$0x1]
      %v616 = vlaneseq
      %v617 = vshrl.u32 %v616, 7
      %v618 = vsub.s32 0, %v617
      %v619 = vrot.slane %v614, %v618
      %v622 = vsel %vm508, %v606, 0
      %v625 = vsel %vm508, %v607, 0
      %v628 = vsel %vm508, %v608, 0
      %v631 = vsel %vm508, %v609, 0
      %633 = vmatprep.subr.mxu0 0.0
      %634 = vmatpush1.msra.mxu0 %v610
      %635 = vmatprep.subr.mxu0 0.0
      %636 = vmatpush1.msra.mxu0 %v611
      %637 = vmatprep.subr.mxu0 0.0
      %638 = vmatpush1.msra.mxu0 %v612
      %639 = vmatprep.subr.mxu0 0.0
      %640 = vmatpush1.msra.mxu0 %v613
      %641 = vmatprep.subr.mxu0 0.0
      %642 = vmatpush1.msra.mxu0 0.0
      %643 = vmatprep.subr.mxu0 0.0
      %644 = vmatpush1.msra.mxu0 0.0
      %645 = vmatprep.subr.mxu0 0.0
      %646 = vmatpush1.msra.mxu0 0.0
      %647 = vmatprep.subr.mxu0 0.0
      %648 = vmatpush1.msra.mxu0 0.0
      %649 = vmatprep.subr.mxu0 0.0
      %650 = vmatpush1.msra.mxu0 0.0
      %651 = vmatprep.subr.mxu0 0.0
      %652 = vmatpush1.msra.mxu0 0.0
      %653 = vmatprep.subr.mxu0 0.0
      %654 = vmatpush1.msra.mxu0 0.0
      %655 = vmatprep.subr.mxu0 0.0
      %656 = vmatpush1.msra.mxu0 0.0
      %657 = vmatprep.subr.mxu0 0.0
      %658 = vmatpush1.msra.mxu0 0.0
      %659 = vmatprep.subr.mxu0 0.0
      %660 = vmatpush1.msra.mxu0 0.0
      %661 = vmatprep.subr.mxu0 0.0
      %662 = vmatpush1.msra.mxu0 0.0
      %663 = vmatprep.subr.mxu0 0.0
      %664 = vmatpush1.msra.mxu0 0.0
      %665 = vmatprep.subr.mxu0 0.0
      %666 = vmatpush1.msra.mxu0 0.0
      %667 = vmatprep.subr.mxu0 0.0
      %668 = vmatpush1.msra.mxu0 0.0
      %669 = vmatprep.subr.mxu0 0.0
      %670 = vmatpush1.msra.mxu0 0.0
      %671 = vmatprep.subr.mxu0 0.0
      %672 = vmatpush1.msra.mxu0 0.0
      %673 = vmatprep.subr.mxu0 0.0
      %674 = vmatpush1.msra.mxu0 0.0
      %675 = vmatprep.subr.mxu0 0.0
      %676 = vmatpush1.msra.mxu0 0.0
      %677 = vmatprep.subr.mxu0 0.0
      %678 = vmatpush1.msra.mxu0 0.0
      %679 = vmatprep.subr.mxu0 0.0
      %680 = vmatpush1.msra.mxu0 0.0
      %681 = vmatprep.subr.mxu0 0.0
      %682 = vmatpush1.msra.mxu0 0.0
      %683 = vmatprep.subr.mxu0 0.0
      %684 = vmatpush1.msra.mxu0 0.0
      %685 = vmatprep.subr.mxu0 0.0
      %686 = vmatpush1.msra.mxu0 0.0
      %687 = vmatprep.subr.mxu0 0.0
      %688 = vmatpush1.msra.mxu0 0.0
      %689 = vmatprep.subr.mxu0 0.0
      %690 = vmatpush1.msra.mxu0 0.0
      %691 = vmatprep.subr.mxu0 0.0
      %692 = vmatpush1.msra.mxu0 0.0
      %693 = vmatprep.subr.mxu0 0.0
      %694 = vmatpush1.msra.mxu0 0.0
      %695 = vmatprep.subr.mxu0 0.0
      %696 = vmatpush1.msra.mxu0 0.0
      %697 = vmatprep.mubr.f32.mxu0 0.0
      %698 = vmatmul.mubr.f32.gmra.mrb[0].mxu0 %v622
      %v699 = vpop.f32.mrb[0].mxu0
      %v700 = vadd.f32 %v619, %v699
      %v701 = vpop.f32.mrb[0].mxu0
      %702 = vmatprep.mubr.f32.mxu0 0.0
      %703 = vmatmul.mubr.f32.gmra.mrb[0].mxu0 %v625
      %v704 = vpop.f32.mrb[0].mxu0
      %v705 = vadd.f32 %v619, %v704
      %v706 = vpop.f32.mrb[0].mxu0
      %707 = vmatprep.mubr.f32.mxu0 0.0
      %708 = vmatmul.mubr.f32.gmra.mrb[0].mxu0 %v628
      %v709 = vpop.f32.mrb[0].mxu0
      %v710 = vadd.f32 %v619, %v709
      %v711 = vpop.f32.mrb[0].mxu0
      %712 = vmatprep.mubr.f32.mxu0 0.0
      %713 = vmatmul.mubr.f32.gmra.mrb[0].mxu0 %v631
      %v714 = vpop.f32.mrb[0].mxu0
      %v715 = vadd.f32 %v619, %v714
      %v716 = vpop.f32.mrb[0].mxu0
      %717 = vdwg.mxu0
      %vm718 = vcmask 64512
      %719 = vst.msk [vmem:[%s369] sm:$0xff] %vm718, %v700
      %720 = vst.msk [vmem:[%s369 + $0x8] sm:$0xff] %vm718, %v705
      %721 = vst.msk [vmem:[%s369 + $0x10] sm:$0xff] %vm718, %v710
      %722 = vst.msk [vmem:[%s369 + $0x18] sm:$0xff] %vm718, %v715
      %v723 = vld [vmem:[%s7] sm:$0xff]
      %v724 = vld [vmem:[%s7 + $0x8] sm:$0xff]
      %v725 = vld [vmem:[%s7 + $0x10] sm:$0xff]
      %v726 = vld [vmem:[%s7 + $0x18] sm:$0xff]
      %v727 = vld [vmem:[%s8] sm:$0x1]
      %v729 = vlaneseq
      %v730 = vshrl.u32 %v729, 7
      %v731 = vsub.s32 0, %v730
      %v732 = vrot.slane %v727, %v731
      %734 = vmatprep.subr.mxu0 0.0
      %735 = vmatpush1.msra.mxu0 %v723
      %736 = vmatprep.subr.mxu0 0.0
      %737 = vmatpush1.msra.mxu0 %v724
      %738 = vmatprep.subr.mxu0 0.0
      %739 = vmatpush1.msra.mxu0 %v725
      %740 = vmatprep.subr.mxu0 0.0
      %741 = vmatpush1.msra.mxu0 %v726
      %742 = vmatprep.subr.mxu0 0.0
      %743 = vmatpush1.msra.mxu0 0.0
      %744 = vmatprep.subr.mxu0 0.0
      %745 = vmatpush1.msra.mxu0 0.0
      %746 = vmatprep.subr.mxu0 0.0
      %747 = vmatpush1.msra.mxu0 0.0
      %748 = vmatprep.subr.mxu0 0.0
      %749 = vmatpush1.msra.mxu0 0.0
      %750 = vmatprep.subr.mxu0 0.0
      %751 = vmatpush1.msra.mxu0 0.0
      %752 = vmatprep.subr.mxu0 0.0
      %753 = vmatpush1.msra.mxu0 0.0
      %754 = vmatprep.subr.mxu0 0.0
      %755 = vmatpush1.msra.mxu0 0.0
      %756 = vmatprep.subr.mxu0 0.0
      %757 = vmatpush1.msra.mxu0 0.0
      %758 = vmatprep.subr.mxu0 0.0
      %759 = vmatpush1.msra.mxu0 0.0
      %760 = vmatprep.subr.mxu0 0.0
      %761 = vmatpush1.msra.mxu0 0.0
      %762 = vmatprep.subr.mxu0 0.0
      %763 = vmatpush1.msra.mxu0 0.0
      %764 = vmatprep.subr.mxu0 0.0
      %765 = vmatpush1.msra.mxu0 0.0
      %766 = vmatprep.subr.mxu0 0.0
      %767 = vmatpush1.msra.mxu0 0.0
      %768 = vmatprep.subr.mxu0 0.0
      %769 = vmatpush1.msra.mxu0 0.0
      %770 = vmatprep.subr.mxu0 0.0
      %771 = vmatpush1.msra.mxu0 0.0
      %772 = vmatprep.subr.mxu0 0.0
      %773 = vmatpush1.msra.mxu0 0.0
      %774 = vmatprep.subr.mxu0 0.0
      %775 = vmatpush1.msra.mxu0 0.0
      %776 = vmatprep.subr.mxu0 0.0
      %777 = vmatpush1.msra.mxu0 0.0
      %778 = vmatprep.subr.mxu0 0.0
      %779 = vmatpush1.msra.mxu0 0.0
      %780 = vmatprep.subr.mxu0 0.0
      %781 = vmatpush1.msra.mxu0 0.0
      %782 = vmatprep.subr.mxu0 0.0
      %783 = vmatpush1.msra.mxu0 0.0
      %784 = vmatprep.subr.mxu0 0.0
      %785 = vmatpush1.msra.mxu0 0.0
      %786 = vmatprep.subr.mxu0 0.0
      %787 = vmatpush1.msra.mxu0 0.0
      %788 = vmatprep.subr.mxu0 0.0
      %789 = vmatpush1.msra.mxu0 0.0
      %790 = vmatprep.subr.mxu0 0.0
      %791 = vmatpush1.msra.mxu0 0.0
      %792 = vmatprep.subr.mxu0 0.0
      %793 = vmatpush1.msra.mxu0 0.0
      %794 = vmatprep.subr.mxu0 0.0
      %795 = vmatpush1.msra.mxu0 0.0
      %796 = vmatprep.subr.mxu0 0.0
      %797 = vmatpush1.msra.mxu0 0.0
      %798 = vmatprep.mubr.f32.mxu0 0.0
      %799 = vmatmul.mubr.f32.gmra.mrb[0].mxu0 %v622
      %v800 = vpop.f32.mrb[0].mxu0
      %v801 = vadd.f32 %v732, %v800
      %v802 = vpop.f32.mrb[0].mxu0
      %803 = vmatprep.mubr.f32.mxu0 0.0
      %804 = vmatmul.mubr.f32.gmra.mrb[0].mxu0 %v625
      %v805 = vpop.f32.mrb[0].mxu0
      %v806 = vadd.f32 %v732, %v805
      %v807 = vpop.f32.mrb[0].mxu0
      %808 = vmatprep.mubr.f32.mxu0 0.0
      %809 = vmatmul.mubr.f32.gmra.mrb[0].mxu0 %v628
      %v810 = vpop.f32.mrb[0].mxu0
      %v811 = vadd.f32 %v732, %v810
      %v812 = vpop.f32.mrb[0].mxu0
      %813 = vmatprep.mubr.f32.mxu0 0.0
      %814 = vmatmul.mubr.f32.gmra.mrb[0].mxu0 %v631
      %v815 = vpop.f32.mrb[0].mxu0
      %v816 = vadd.f32 %v732, %v815
      %v817 = vpop.f32.mrb[0].mxu0
      %818 = vdwg.mxu0
      %819 = vst.msk [vmem:[%s375] sm:$0xff] %vm718, %v801
      %820 = vst.msk [vmem:[%s375 + $0x8] sm:$0xff] %vm718, %v806
      %821 = vst.msk [vmem:[%s375 + $0x10] sm:$0xff] %vm718, %v811
      %822 = vst.msk [vmem:[%s375 + $0x18] sm:$0xff] %vm718, %v816
      %s823 = smul.u32 4, %s22
      %p824 = scmp.lt.s32.totalorder %s823, 7
      %s825 = scalar_select %p824, %s823, 7
      %s826 = smul.addr %s825, 8
      %s827 = scalar_lea.vmem %s9, %s826
      %s828 = smul.u32 4, %s22
      %p829 = scmp.lt.s32.totalorder %s828, 7
      %s830 = scalar_select %p829, %s828, 7
      %s831 = smul.addr %s830, 8
      %s832 = scalar_lea.vmem %s10, %s831
      // Predicated region
      $region57: #{tpu_custom_call.1} parent=55 // pred_check
        %p833 = pneg %p234
      $region58: #{tpu_custom_call.1} parent=55 // pred_check_branch
        %835 = sbr.rel (%p833) target = $region60
      $region59: #{tpu_custom_call.1} parent=55 // pred_region
        %s836 = smul.u32 4, %s22
      $region60: #{tpu_custom_call.1} parent=55 // pred_fallthru
        _
      // Predicated region
      $region61: #{tpu_custom_call.1} parent=55 // pred_check
        %p837 = pneg %p260
      $region62: #{tpu_custom_call.1} parent=55 // pred_check_branch
        %839 = sbr.rel (%p837) target = $region64
      $region63: #{tpu_custom_call.1} parent=55 // pred_region
        %s840 = smul.u32 4, %s22
      $region64: #{tpu_custom_call.1} parent=55 // pred_fallthru
        _
    $region56: #{tpu_custom_call.1} parent=5 // pred_fallthru
      _
    %p841 = scmp.le.s32.totalorder 2, %s17
    // Predicated region
    $region65: #{tpu_custom_call.1} parent=5 // pred_check
      %p842 = pneg %p841
    $region66: #{tpu_custom_call.1} parent=5 // pred_check_branch
      %844 = sbr.rel (%p842) target = $region68
    $region67: #{tpu_custom_call.1} parent=5 // pred_region
      %s845 = ssub.s32 %s17, 2
      // Predicated region
      $region69: #{tpu_custom_call.1} parent=67 // pred_check
        %p846 = pneg %p240
      $region70: #{tpu_custom_call.1} parent=67 // pred_check_branch
        %848 = sbr.rel (%p846) target = $region72
      $region71: #{tpu_custom_call.1} parent=67 // pred_region
        %s849 = smul.u32 4, %s23
        %p850 = scmp.lt.s32.totalorder %s849, 7
        %s851 = scalar_select %p850, %s849, 7
        %s852 = smul.addr %s851, 8
        %s853 = scalar_lea.vmem %s9, %s852
      $region72: #{tpu_custom_call.1} parent=67 // pred_fallthru
        _
      // Predicated region
      $region73: #{tpu_custom_call.1} parent=67 // pred_check
        %p854 = pneg %p266
      $region74: #{tpu_custom_call.1} parent=67 // pred_check_branch
        %856 = sbr.rel (%p854) target = $region76
      $region75: #{tpu_custom_call.1} parent=67 // pred_region
        %s857 = smul.u32 4, %s23
        %p858 = scmp.lt.s32.totalorder %s857, 7
        %s859 = scalar_select %p858, %s857, 7
        %s860 = smul.addr %s859, 8
        %s861 = scalar_lea.vmem %s10, %s860
      $region76: #{tpu_custom_call.1} parent=67 // pred_fallthru
        _
    $region68: #{tpu_custom_call.1} parent=5 // pred_fallthru
      _
  $region6: #{tpu_custom_call.1} parent=0 // loop_footer
    %s21 = sadd.s32 1, %s17
  $region7: #{tpu_custom_call.1} parent=0 // loop_footer_branch
    %16 = sbr.rel target = $region3
  $region8: #{tpu_custom_call.1} parent=0 // loop_exit
    _

</llo_original>
